<compile_context>
chip_gen: v5e
topology: v5e:2x2
jax: 0.10.0
libtpu: 0.0.40
codegen_flags: <defaults>
</compile_context>

<pallas_src>
import jax
import jax.numpy as jnp
from jax.experimental import pallas as pl
from jax.experimental.pallas import tpu as pltpu


def _round_up(x, m):
    return ((x + m - 1) // m) * m


def _round_down(x, m):
    return (x // m) * m


def _tpu_vmem_capacity_bytes():
    """Physical VMEM per TensorCore; fall back to the tightest generation."""
    try:
        return int(pltpu.get_tpu_info().vmem_capacity_bytes)
    except Exception:
        return 64 << 20  # assume v7x-class (64 MiB/TC) -> most conservative


def _budgets():
    """(live-buffer budget, vmem_limit ceiling) per TPU generation."""
    cap = _tpu_vmem_capacity_bytes()
    if cap <= (64 << 20):          # v7x class: 64 MiB per TC, 2 TCs
        return 24 << 20, 56 << 20
    return 88 << 20, 100 << 20     # v5e/v6e class: 128 MiB physical VMEM


def _pick_tiles(B, D, itemsize, buf_budget):
    """Byte-aware (tm, tk) tile sizes.

    tm: batch rows per step — as big as the VMEM budget allows, but capped so
        the batch grid has >= 2 steps when B allows (v7x megacore), and always
        a multiple of the sublane alignment for the x dtype.
    tk: feature columns per step — the full D unless even a minimal-row tile
        would overflow the budget, in which case D is split (tk multiple of
        128 so lane tiling stays legal).
    """
    row_align = 16 if itemsize == 2 else 8
    # The 3-wide w/out/acc buffers are tiny; give the x double-buffer the bulk.
    x_budget = buf_budget - max(buf_budget // 8, 2 << 20)

    max_rows_full_d = x_budget // (2 * D * itemsize)
    if max_rows_full_d >= row_align:
        tk = D                                   # whole feature dim per step
        tm_cap = _round_down(max_rows_full_d, row_align)
    else:
        # D too large for even a minimal-row tile: split the reduction dim.
        tm_cap = 16 * row_align                  # keep row count chunky
        tk = _round_down(x_budget // (2 * tm_cap * itemsize), 128)
        tk = max(tk, 128)

    # Batch tile: don't exceed (aligned) B; leave >= 2 tiles for megacore.
    tm_b = _round_up(B, row_align)
    if B > row_align:
        tm_b = min(tm_b, _round_up(pl.cdiv(B, 2), row_align))
    tm = max(min(tm_cap, tm_b), row_align)
    return tm, tk


def _make_kernel(D, tk):
    needs_mask = (D % tk) != 0   # only possible on the K-split path

    def kernel(x_ref, w_ref, b_ref, o_ref, acc_ref):
        k = pl.program_id(1)

        @pl.when(k == 0)
        def _init():
            acc_ref[...] = jnp.zeros_like(acc_ref)

        x = x_ref[...]
        if needs_mask:
            # Zero the out-of-range feature columns of the padded last K tile
            # (w is zero-padded in the wrapper, so masked columns contribute 0).
            col = jax.lax.broadcasted_iota(jnp.int32, x.shape, 1)
            x = jnp.where(col < (D - k * tk), x, jnp.zeros_like(x))

        acc_ref[...] += jnp.dot(x, w_ref[...], preferred_element_type=jnp.float32)

        @pl.when(k == pl.num_programs(1) - 1)
        def _finalize():
            o_ref[...] = (acc_ref[...] + b_ref[...]).astype(o_ref.dtype)

    return kernel


def ensemble_forward(x, wa, wb, wc, ba, bb, bc, w_fc, b_fc):
    """x: [B, D].  wa/wb/wc: [D, 3].  ba/bb/bc: [1, 3].
    w_fc: [3, 3] already in [in, out] layout.  b_fc: [1, 3].

    x is used in its incoming dtype (pass bf16 only if it is already bf16
    upstream — a wrapper-side cast would add a full extra HBM pass).
    Accumulation is always f32 via preferred_element_type.
    """
    B, D = x.shape

    # ---- Algebraic fold (wrapper-side, weight-only, negligible cost) ----
    w_eff = (wa + wb + wc) @ w_fc                     # [D, 3]
    b_eff = ((ba + bb + bc) @ w_fc + b_fc).astype(jnp.float32)   # [1, 3]

    compute_dtype = x.dtype
    w_c = w_eff.astype(compute_dtype)                 # tiny; cast is free-ish
    itemsize = jnp.dtype(compute_dtype).itemsize

    # ---- Byte-aware, generation-aware tiling ----
    buf_budget, limit_ceiling = _budgets()
    tm, tk = _pick_tiles(B, D, itemsize, buf_budget)

    nb = pl.cdiv(B, tm)
    nk = pl.cdiv(D, tk)
    if nk * tk != D:
        # Pad the (tiny) folded weight so no reduction tile reads garbage rows.
        w_c = jnp.pad(w_c, ((0, nk * tk - D), (0, 0)))

    # vmem_limit from the actual live buffers (+ slack), clamped per generation.
    buf_bytes = (2 * tm * tk * itemsize      # x double-buffer
                 + 2 * tk * 3 * itemsize     # w_eff double-buffer
                 + 2 * 1 * 3 * 4             # bias
                 + 2 * tm * 3 * 4            # output double-buffer
                 + tm * 3 * 4)               # f32 accumulator scratch
    vmem_limit = int(min(limit_ceiling, max(buf_bytes + (2 << 20), 32 << 20)))

    kernel = _make_kernel(D, tk)

    return pl.pallas_call(
        kernel,
        out_shape=jax.ShapeDtypeStruct((B, 3), jnp.float32),
        grid=(nb, nk),
        in_specs=[
            pl.BlockSpec((tm, tk), lambda i, k: (i, k)),   # x: batch x feature tiles
            pl.BlockSpec((tk, 3), lambda i, k: (k, 0)),    # W_eff: feature tiles
            pl.BlockSpec((1, 3), lambda i, k: (0, 0)),     # b_eff: resident
        ],
        out_specs=pl.BlockSpec((tm, 3), lambda i, k: (i, 0)),
        scratch_shapes=[pltpu.VMEM((tm, 3), jnp.float32)],
        compiler_params=pltpu.CompilerParams(
            # Batch tiles independent -> megacore sharding; K is a reduction.
            dimension_semantics=("parallel", "arbitrary"),
            vmem_limit_bytes=vmem_limit,
        ),
    )(x, w_c, b_eff)


def reference_forward(x, wa, wb, wc, ba, bb, bc, w_fc, b_fc):
    # Mirrors the PyTorch module structure exactly (3 heads, sum, fc).
    out1 = x @ wa + ba
    out2 = x @ wb + bb
    out3 = x @ wc + bc
    out = out1 + out2 + out3
    return out @ w_fc + b_fc


if __name__ == "__main__":
    key = jax.random.PRNGKey(0)
    B, D = 8, 32   # small shapes: batch=8, hidden=32, ensemble heads output 3 logits

    keys = jax.random.split(key, 10)
    x    = jax.random.normal(keys[0], (B, D), dtype=jnp.float32)
    wa   = jax.random.normal(keys[1], (D, 3), dtype=jnp.float32) * 0.1
    wb   = jax.random.normal(keys[2], (D, 3), dtype=jnp.float32) * 0.1
    wc   = jax.random.normal(keys[3], (D, 3), dtype=jnp.float32) * 0.1
    ba   = jax.random.normal(keys[4], (1, 3), dtype=jnp.float32) * 0.1
    bb   = jax.random.normal(keys[5], (1, 3), dtype=jnp.float32) * 0.1
    bc   = jax.random.normal(keys[6], (1, 3), dtype=jnp.float32) * 0.1
    # PyTorch nn.Linear stores weight as [out, in]; kernel wants [in, out].
    w_fc_torch = jax.random.normal(keys[7], (3, 3), dtype=jnp.float32) * 0.1
    w_fc = w_fc_torch.T
    b_fc = jax.random.normal(keys[8], (1, 3), dtype=jnp.float32) * 0.1

    out = ensemble_forward(x, wa, wb, wc, ba, bb, bc, w_fc, b_fc)
    out = jax.block_until_ready(out)

    ref = reference_forward(x, wa, wb, wc, ba, bb, bc, w_fc, b_fc)
    assert out.shape == (B, 3)
    # Note: the algebraic fold changes f32 summation order slightly; results
    # are not bit-identical to the unfused reference but well within tolerance.
    assert jnp.allclose(out, ref, atol=1e-4, rtol=1e-4), "mismatch vs reference"

    print("KERNEL_OK")
</pallas_src>

<mosaic_0001>
module attributes {stable_mosaic.version = 11 : i64} {
  func.func @kernel(%arg0: i32, %arg1: i32, %arg2: memref<8x32xf32, #tpu.memory_space<vmem>>, %arg3: memref<32x3xf32, #tpu.memory_space<vmem>>, %arg4: memref<1x3xf32, #tpu.memory_space<vmem>>, %arg5: memref<8x3xf32, #tpu.memory_space<vmem>>, %arg6: memref<8x3xf32, #tpu.memory_space<vmem>>) attributes {dimension_semantics = [#tpu.dimension_semantics<parallel>, #tpu.dimension_semantics<arbitrary>], iteration_bounds = array<i64: 1, 1>, scalar_prefetch = 0 : i64, scratch_operands = 1 : i64, tpu.core_type = #tpu.core_type<tc>, window_params = [{transform_indices = @transform_0, window_bounds = array<i64: 8, 32>}, {transform_indices = @transform_1, window_bounds = array<i64: 32, 3>}, {pipeline_mode = #tpu.pipeline_mode<synchronous>, transform_indices = @transform_2, window_bounds = array<i64: 1, 3>}, {transform_indices = @transform_3, window_bounds = array<i64: 8, 3>}]} {
    %c0_i32 = arith.constant 0 : i32
    %0 = arith.cmpi eq, %arg1, %c0_i32 : i32
    %1 = arith.extui %0 : i1 to i32
    %c0_i32_0 = arith.constant 0 : i32
    %2 = arith.cmpi ne, %1, %c0_i32_0 : i32
    scf.if %2 {
      %cst_10 = arith.constant 0.000000e+00 : f32
      %12 = vector.broadcast %cst_10 : f32 to vector<8x3xf32>
      %c0_11 = arith.constant 0 : index
      %c0_12 = arith.constant 0 : index
      %13 = vector.load %arg6[%c0_11, %c0_12] : memref<8x3xf32, #tpu.memory_space<vmem>>, vector<8x3xf32>
      tpu.vector_store %arg6[%c0_11, %c0_12], %12 {strides = array<i32>} : memref<8x3xf32, #tpu.memory_space<vmem>>, vector<8x3xf32>,
    } else {
    }
    %c0 = arith.constant 0 : index
    %c0_1 = arith.constant 0 : index
    %3 = vector.load %arg2[%c0, %c0_1] : memref<8x32xf32, #tpu.memory_space<vmem>>, vector<8x32xf32>
    %c0_2 = arith.constant 0 : index
    %c0_3 = arith.constant 0 : index
    %4 = vector.load %arg6[%c0_2, %c0_3] : memref<8x3xf32, #tpu.memory_space<vmem>>, vector<8x3xf32>
    %c0_4 = arith.constant 0 : index
    %c0_5 = arith.constant 0 : index
    %5 = vector.load %arg3[%c0_4, %c0_5] : memref<32x3xf32, #tpu.memory_space<vmem>>, vector<32x3xf32>
    %cst = arith.constant dense<0.000000e+00> : vector<8x3xf32>
    %6 = tpu.matmul %3, %5, %cst {dimension_numbers = #tpu.dot_dimension_numbers<[1], [0], [0], [1], [0, 0, 1, 1], [], []>} : vector<8x32xf32>, vector<32x3xf32>, vector<8x3xf32> -> vector<8x3xf32>
    %7 = arith.addf %4, %6 : vector<8x3xf32>
    %c0_6 = arith.constant 0 : index
    %c0_7 = arith.constant 0 : index
    %8 = vector.load %arg6[%c0_6, %c0_7] : memref<8x3xf32, #tpu.memory_space<vmem>>, vector<8x3xf32>
    tpu.vector_store %arg6[%c0_6, %c0_7], %7 {strides = array<i32>} : memref<8x3xf32, #tpu.memory_space<vmem>>, vector<8x3xf32>,
    %c0_i32_8 = arith.constant 0 : i32
    %9 = arith.cmpi eq, %arg1, %c0_i32_8 : i32
    %10 = arith.extui %9 : i1 to i32
    %c0_i32_9 = arith.constant 0 : i32
    %11 = arith.cmpi ne, %10, %c0_i32_9 : i32
    scf.if %11 {
      %c0_10 = arith.constant 0 : index
      %c0_11 = arith.constant 0 : index
      %12 = vector.load %arg6[%c0_10, %c0_11] : memref<8x3xf32, #tpu.memory_space<vmem>>, vector<8x3xf32>
      %c0_12 = arith.constant 0 : index
      %c0_13 = arith.constant 0 : index
      %13 = vector.load %arg4[%c0_12, %c0_13] : memref<1x3xf32, #tpu.memory_space<vmem>>, vector<1x3xf32>
      %14 = vector.broadcast %13 : vector<1x3xf32> to vector<8x3xf32>
      %15 = arith.addf %12, %14 : vector<8x3xf32>
      %c0_14 = arith.constant 0 : index
      %c0_15 = arith.constant 0 : index
      %16 = vector.load %arg5[%c0_14, %c0_15] : memref<8x3xf32, #tpu.memory_space<vmem>>, vector<8x3xf32>
      tpu.vector_store %arg5[%c0_14, %c0_15], %15 {strides = array<i32>} : memref<8x3xf32, #tpu.memory_space<vmem>>, vector<8x3xf32>,
    } else {
    }
    return
  }
  func.func @transform_0(%arg0: i32, %arg1: i32) -> (i32, i32) {
    %c0_i32 = arith.constant 0 : i32
    return %arg0, %arg1 : i32, i32
  }
  func.func @transform_1(%arg0: i32, %arg1: i32) -> (i32, i32) {
    %c0_i32 = arith.constant 0 : i32
    %c0_i32_0 = arith.constant 0 : i32
    return %arg1, %c0_i32 : i32, i32
  }
  func.func @transform_2(%arg0: i32, %arg1: i32) -> (i32, i32) {
    %c0_i32 = arith.constant 0 : i32
    %c0_i32_0 = arith.constant 0 : i32
    %c0_i32_1 = arith.constant 0 : i32
    return %c0_i32, %c0_i32_0 : i32, i32
  }
  func.func @transform_3(%arg0: i32, %arg1: i32) -> (i32, i32) {
    %c0_i32 = arith.constant 0 : i32
    %c0_i32_0 = arith.constant 0 : i32
    return %arg0, %c0_i32 : i32, i32
  }
}

</mosaic_0001>

<llo_original>
// kernel: tpu_custom_call.1
$region0: #{tpu_custom_call.1}
  #allocation0 [shape = 'u32[]', space=smem, size = 0x4, offset = 0x4, fixed_abs, tag = 'smem constant byte address 0x4 - core index']
  #allocation1 [shape = 'u32[72,128]{1,0:T(1,128)}', space=vmem, size = 0x9000, scoped, tag = 'internal scratch']
  #allocation2 [shape = 'f32[8,3]{1,0:T(8,128)}', space=vmem, size = 0x1000, scoped, tag = 'scratch operand']
  %s0 = inlined_call_operand.vmem [shape: f32[8,32], index: 0, kind: input, shape index: {}]
  %s1 = inlined_call_operand.vmem [shape: f32[32,3], index: 1, kind: input, shape index: {}]
  %s2 = inlined_call_operand.vmem [shape: f32[1,3], index: 2, kind: input, shape index: {}]
  %s3 = inlined_call_operand.vmem [shape: f32[8,3], index: 3, kind: output, shape index: {}]
  %s4 = sld [smem:[#allocation0]]
  $region30: #{tpu_custom_call.1} parent=0
    _
  %s6 = ssub.s32 1, %s4
  %s7 = scalar_select 0, %s6, %s4
  // Predicated region
  $region2: #{tpu_custom_call.1} parent=0 // pred_check
    _
  $region3: #{tpu_custom_call.1} parent=0 // pred_check_branch
    %9 = sbr.rel (0) target = $region5
  $region4: #{tpu_custom_call.1} parent=0 // pred_region
    _
  $region5: #{tpu_custom_call.1} parent=0 // pred_fallthru
    _
  // Predicated region
  $region6: #{tpu_custom_call.1} parent=0 // pred_check
    _
  $region7: #{tpu_custom_call.1} parent=0 // pred_check_branch
    %11 = sbr.rel (0) target = $region9
  $region8: #{tpu_custom_call.1} parent=0 // pred_region
    _
  $region9: #{tpu_custom_call.1} parent=0 // pred_fallthru
    _
  // Predicated region
  $region10: #{tpu_custom_call.1} parent=0 // pred_check
    _
  $region11: #{tpu_custom_call.1} parent=0 // pred_check_branch
    %13 = sbr.rel (0) target = $region13
  $region12: #{tpu_custom_call.1} parent=0 // pred_region
    _
  $region13: #{tpu_custom_call.1} parent=0 // pred_fallthru
    _
  %p14 = scmp.eq.s32.totalorder 0, 0
  // Predicated region
  $region14: #{tpu_custom_call.1} parent=0 // pred_check
    %p15 = pneg %p14
  $region15: #{tpu_custom_call.1} parent=0 // pred_check_branch
    %17 = sbr.rel (%p15) target = $region17
  $region16: #{tpu_custom_call.1} parent=0 // pred_region
    %vm18 = vcmask 23552
    %19 = vst.msk [vmem:[#allocation2] sm:$0xff] %vm18, 0.0
  $region17: #{tpu_custom_call.1} parent=0 // pred_fallthru
    _
  %v20 = vld [vmem:[%s0] sm:$0xff]
  %v21 = vld [vmem:[#allocation2] sm:$0xff]
  %v22 = vld [vmem:[%s1] sm:$0xff]
  %v23 = vld [vmem:[%s1 + $0x8] sm:$0xff]
  %v24 = vld [vmem:[%s1 + $0x10] sm:$0xff]
  %v25 = vld [vmem:[%s1 + $0x18] sm:$0xff]
  %vm26 = vcmask 261120
  %v28 = vsel %vm26, %v20, 0
  %30 = vmatpush.msra.mxu0 0.0
  %31 = vmatpush.msra.mxu0 0.0
  %32 = vmatpush.msra.mxu0 0.0
  %33 = vmatpush.msra.mxu0 0.0
  %34 = vmatpush.msra.mxu0 0.0
  %35 = vmatpush.msra.mxu0 0.0
  %36 = vmatpush.msra.mxu0 0.0
  %37 = vmatpush.msra.mxu0 0.0
  %38 = vmatpush.msra.mxu0 0.0
  %39 = vmatpush.msra.mxu0 0.0
  %40 = vmatpush.msra.mxu0 0.0
  %41 = vmatpush.msra.mxu0 0.0
  %42 = vmatpush.msra.mxu0 %v25
  %43 = vmatpush.msra.mxu0 %v24
  %44 = vmatpush.msra.mxu0 %v23
  %45 = vmatpush.msra.mxu0 %v22
  %46 = vmatmul.f32.gmra.mxu0 %v28
  %v47 = vpop.f32.mrf.mxu0
  %v48 = vadd.f32 0.0, %v47
  %49 = vdwg.mxu0
  %v50 = vadd.f32 %v21, %v48
  %vm51 = vcmask 23552
  %52 = vst.msk [vmem:[#allocation2] sm:$0xff] %vm51, %v50
  // Predicated region
  $region18: #{tpu_custom_call.1} parent=0 // pred_check
    %p53 = pneg %p14
  $region19: #{tpu_custom_call.1} parent=0 // pred_check_branch
    %55 = sbr.rel (%p53) target = $region21
  $region20: #{tpu_custom_call.1} parent=0 // pred_region
    %v56 = vld [vmem:[#allocation2] sm:$0xff]
    %v57 = vld [vmem:[%s2] sm:$0x1]
    %v59 = vperm.slane %v57, 0
    %v61 = vadd.f32 %v56, %v59
    %62 = vst.msk [vmem:[%s3] sm:$0xff] %vm51, %v61
  $region21: #{tpu_custom_call.1} parent=0 // pred_fallthru
    _
  // Predicated region
  $region22: #{tpu_custom_call.1} parent=0 // pred_check
    _
  $region23: #{tpu_custom_call.1} parent=0 // pred_check_branch
    %64 = sbr.rel (0) target = $region25
  $region24: #{tpu_custom_call.1} parent=0 // pred_region
    _
  $region25: #{tpu_custom_call.1} parent=0 // pred_fallthru
    _
  // Predicated region
  $region26: #{tpu_custom_call.1} parent=0 // pred_check
    _
  $region27: #{tpu_custom_call.1} parent=0 // pred_check_branch
    %66 = sbr.rel (0) target = $region29
  $region28: #{tpu_custom_call.1} parent=0 // pred_region
    _
  $region29: #{tpu_custom_call.1} parent=0 // pred_fallthru
    _

</llo_original>
